<compile_context>
chip_gen: v6e
topology: v6e:2x2x1
jax: 0.10.0
libtpu: 0.0.40
codegen_flags: <defaults>
</compile_context>

<pallas_src>
import math

import jax
import jax.numpy as jnp
from jax import lax
from jax.experimental import pallas as pl
from jax.experimental.pallas import tpu as pltpu


_VMEM_LIMIT_BYTES = 32 * 1024 * 1024   # explicit scoped-VMEM limit (fits all gens)


# ---------------------------------------------------------------------------
# Kernel 1: embedding combine:  tok * sqrt(D) + positional enc + time emb.
# (token gather + sin/cos time embedding are tiny XLA ops in the wrapper)
# ---------------------------------------------------------------------------
def _make_embed_add_kernel(scale: float):
    def kernel(tok_ref, pe_ref, time_ref, out_ref):
        # tok_ref : (S, D) f32   (one batch row, already gathered)
        # pe_ref  : (S, D) f32
        # time_ref: (1, D) f32   (this row's time embedding)
        # out_ref : (S, D) f32   -> single full-width lane-dense store
        out_ref[...] = tok_ref[...] * scale + pe_ref[...] + time_ref[...]
    return kernel


def embed_combine(tok, pe_s, time_emb):
    B, S, D = tok.shape
    kernel = _make_embed_add_kernel(math.sqrt(D))
    time3 = time_emb.reshape(B, 1, D)
    return pl.pallas_call(
        kernel,
        out_shape=jax.ShapeDtypeStruct((B, S, D), jnp.float32),
        grid=(B,),
        in_specs=[
            pl.BlockSpec((None, S, D), lambda b: (b, 0, 0)),
            pl.BlockSpec((S, D), lambda b: (0, 0)),
            pl.BlockSpec((None, 1, D), lambda b: (b, 0, 0)),
        ],
        out_specs=pl.BlockSpec((None, S, D), lambda b: (b, 0, 0)),
        compiler_params=pltpu.CompilerParams(
            dimension_semantics=("parallel",),
            vmem_limit_bytes=_VMEM_LIMIT_BYTES),
    )(tok, pe_s, time3)


# ---------------------------------------------------------------------------
# Kernel 2: the whole TransformerEncoder stack in ONE pallas_call.
#   grid = (batch, layer); activations stay VMEM-resident across the layer
#   axis (constant output block index), layer weights stream per layer step.
# ---------------------------------------------------------------------------
_STACKED_PARAM_ORDER = ("wqkv", "bqkv", "wo", "bo", "g1", "b1n",
                        "w1", "b1", "w2", "b2", "g2", "b2n")


def _make_encoder_stack_kernel(seq_len: int, d_model: int, n_head: int,
                               dim_ff: int, eps: float = 1e-5):
    assert d_model % n_head == 0
    head_dim = d_model // n_head
    inv_sqrt_hd = 1.0 / math.sqrt(head_dim)

    def layer_norm(z, g, b):
        mu = jnp.mean(z, axis=-1, keepdims=True)
        zc = z - mu
        var = jnp.mean(zc * zc, axis=-1, keepdims=True)
        return zc * lax.rsqrt(var + eps) * g + b

    def kernel(x_ref, wqkv_ref, bqkv_ref, wo_ref, bo_ref, g1_ref, b1n_ref,
               w1_ref, b1_ref, w2_ref, b2_ref, g2_ref, b2n_ref, out_ref):
        l = pl.program_id(1)

        # Layer 0 seeds the VMEM-resident activation carry; the output block
        # keeps the same index across the layer axis, so it never round-trips
        # HBM between layers.
        @pl.when(l == 0)
        def _():
            out_ref[...] = x_ref[...]

        x = out_ref[...]                                           # (S, D) f32
        xb = x.astype(jnp.bfloat16)

        # --- self-attention: fused QKV projection (bf16 MXU, f32 acc) ------
        qkv = jnp.dot(xb, wqkv_ref[...],
                      preferred_element_type=jnp.float32) + bqkv_ref[...]
        qkv = qkv.astype(jnp.bfloat16)                             # (S, 3D)

        # Per-head attention accumulated directly through W_o:
        #   concat_h(ctx_h) @ Wo == sum_h ctx_h @ Wo[h*hd:(h+1)*hd, :]
        # -> no lane-axis concatenate, no narrow masked stores, no head list
        #    kept live.
        # TODO(synk): flash-style KV tiling for long S (full (S,S) scores here).
        attn = jnp.zeros((seq_len, d_model), jnp.float32)
        for h in range(n_head):                                    # static loop
            lo = h * head_dim
            qh = qkv[:, lo:lo + head_dim]
            kh = qkv[:, d_model + lo:d_model + lo + head_dim]
            vh = qkv[:, 2 * d_model + lo:2 * d_model + lo + head_dim]
            s = lax.dot_general(
                qh, kh, dimension_numbers=(((1,), (1,)), ((), ())),
                preferred_element_type=jnp.float32) * inv_sqrt_hd  # (S, S) f32
            s = s - jnp.max(s, axis=-1, keepdims=True)
            p = jnp.exp(s)
            p = p * pl.reciprocal(jnp.sum(p, axis=-1, keepdims=True),
                                  approx=True)
            ctx = jnp.dot(p.astype(jnp.bfloat16), vh,
                          preferred_element_type=jnp.float32)      # (S, hd)
            attn = attn + jnp.dot(ctx.astype(jnp.bfloat16),
                                  wo_ref[lo:lo + head_dim, :],
                                  preferred_element_type=jnp.float32)
        attn = attn + bo_ref[...]

        # --- post-LN + ReLU MLP (nn.TransformerEncoderLayer defaults) ------
        h1 = layer_norm(x + attn, g1_ref[...], b1n_ref[...])
        ff = jnp.dot(h1.astype(jnp.bfloat16), w1_ref[...],
                     preferred_element_type=jnp.float32) + b1_ref[...]
        ff = jnp.maximum(ff, 0.0)
        ff = jnp.dot(ff.astype(jnp.bfloat16), w2_ref[...],
                     preferred_element_type=jnp.float32) + b2_ref[...]
        # TODO(synk): dropout omitted (eval mode / p = 0).
        out_ref[...] = layer_norm(h1 + ff, g2_ref[...], b2n_ref[...])

    return kernel


def encoder_stack(x, params, n_head):
    B, S, D = x.shape
    L = params["wqkv"].shape[0]
    F = params["w1"].shape[2]
    kernel = _make_encoder_stack_kernel(S, D, n_head, F)

    def wspec(shape):
        # stacked (L, r, c) -> per-layer (r, c) block, streamed per layer step
        return pl.BlockSpec((None,) + tuple(shape[1:]), lambda b, l: (l, 0, 0))

    weights = [params[name] for name in _STACKED_PARAM_ORDER]
    return pl.pallas_call(
        kernel,
        out_shape=jax.ShapeDtypeStruct((B, S, D), jnp.float32),
        grid=(B, L),
        in_specs=[pl.BlockSpec((None, S, D), lambda b, l: (b, 0, 0))]
                 + [wspec(w.shape) for w in weights],
        out_specs=pl.BlockSpec((None, S, D), lambda b, l: (b, 0, 0)),
        compiler_params=pltpu.CompilerParams(
            dimension_semantics=("parallel", "arbitrary"),
            vmem_limit_bytes=_VMEM_LIMIT_BYTES),
    )(x, *weights)


# ---------------------------------------------------------------------------
# Kernel 3: output projection to vocab logits, tiled along the vocab axis.
# ---------------------------------------------------------------------------
def _output_proj_kernel(x_ref, w_ref, b_ref, out_ref):
    out_ref[...] = (jnp.dot(x_ref[...].astype(jnp.bfloat16), w_ref[...],
                            preferred_element_type=jnp.float32) + b_ref[...])


def _vocab_tile(V: int) -> int:
    if V % 128 == 0:
        for tv in (1024, 512, 256, 128):
            if V % tv == 0:
                return tv
    return V      # small / irregular vocab: full-extent block


def output_projection(x, w_out, b_out):
    B, S, D = x.shape
    V = w_out.shape[1]
    TV = _vocab_tile(V)
    nv = V // TV
    return pl.pallas_call(
        _output_proj_kernel,
        out_shape=jax.ShapeDtypeStruct((B, S, V), jnp.float32),
        grid=(B, nv),
        in_specs=[pl.BlockSpec((None, S, D), lambda b, j: (b, 0, 0)),
                  pl.BlockSpec((D, TV), lambda b, j: (0, j)),
                  pl.BlockSpec((1, TV), lambda b, j: (0, j))],
        out_specs=pl.BlockSpec((None, S, TV), lambda b, j: (b, 0, j)),
        compiler_params=pltpu.CompilerParams(
            dimension_semantics=("parallel", "parallel"),
            vmem_limit_bytes=_VMEM_LIMIT_BYTES),
    )(x, w_out, b_out)


# ---------------------------------------------------------------------------
# Parameters + full forward pass.
# ---------------------------------------------------------------------------
def init_params(key, vocab_size, d_model, n_head, dim_ff, num_layers, max_seq_len):
    assert d_model % 2 == 0 and d_model // 2 > 1, "d_model must be even, >= 4"
    keys = jax.random.split(key, 3)

    # Token table stays f32 (the lookup is an XLA gather, not a kernel matmul).
    # Scaled down so attention scores are O(1) (well-conditioned numerics check).
    token_table = 0.1 * jax.random.normal(keys[0], (vocab_size, d_model),
                                          jnp.float32)

    # Positional-encoding buffer (same formula as the PyTorch module).
    pos = jnp.arange(max_seq_len, dtype=jnp.float32)[:, None]
    div = jnp.exp(jnp.arange(0, d_model, 2, dtype=jnp.float32)
                  * (-math.log(10000.0) / d_model))
    pe = jnp.zeros((max_seq_len, d_model), jnp.float32)
    pe = pe.at[:, 0::2].set(jnp.sin(pos * div))
    pe = pe.at[:, 1::2].set(jnp.cos(pos * div))

    # Time-embedding frequencies (SinusoidalTimeEmbedding).
    half = d_model // 2
    time_freqs = jnp.exp(jnp.arange(half, dtype=jnp.float32)
                         * (-math.log(10000.0) / (half - 1)))

    def dense(k, fan_in, fan_out, w_dtype):
        kw, kb = jax.random.split(k)
        w = (jax.random.normal(kw, (fan_in, fan_out), jnp.float32)
             / math.sqrt(fan_in)).astype(w_dtype)
        b = 0.01 * jax.random.normal(kb, (1, fan_out), jnp.float32)
        return w, b

    # Matmul weights are held in bf16 (MXU input dtype); biases / LN are f32.
    L = num_layers
    lkeys = jax.random.split(keys[1], L)
    wqkv, bqkv, wo, bo, w1, b1, w2, b2 = ([] for _ in range(8))
    for i in range(L):
        ks = jax.random.split(lkeys[i], 4)
        a, ab = dense(ks[0], d_model, 3 * d_model, jnp.bfloat16)
        c, cb = dense(ks[1], d_model, d_model, jnp.bfloat16)
        d, db = dense(ks[2], d_model, dim_ff, jnp.bfloat16)
        e, eb = dense(ks[3], dim_ff, d_model, jnp.bfloat16)
        wqkv.append(a); bqkv.append(ab); wo.append(c); bo.append(cb)
        w1.append(d); b1.append(db); w2.append(e); b2.append(eb)

    stack = lambda xs: jnp.stack(xs, axis=0)
    w_out, b_out = dense(keys[2], d_model, vocab_size, jnp.bfloat16)

    return dict(
        token_table=token_table, pe=pe, time_freqs=time_freqs,
        wqkv=stack(wqkv), bqkv=stack(bqkv), wo=stack(wo), bo=stack(bo),
        g1=jnp.ones((L, 1, d_model), jnp.float32),
        b1n=jnp.zeros((L, 1, d_model), jnp.float32),
        w1=stack(w1), b1=stack(b1), w2=stack(w2), b2=stack(b2),
        g2=jnp.ones((L, 1, d_model), jnp.float32),
        b2n=jnp.zeros((L, 1, d_model), jnp.float32),
        w_out=w_out, b_out=b_out)


def transformer_forward(params, src_ids, t, n_head, context_mask=None,
                        mask_token_id=0):
    if context_mask is not None:
        # CFG branch of the PyTorch forward (elementwise select, left to XLA).
        src_ids = jnp.where(context_mask[:, None], mask_token_id, src_ids)
    B, S = src_ids.shape
    D = params["token_table"].shape[1]

    # Token gather + sinusoidal time embedding: tiny XLA ops (review: no
    # one-hot MXU lookup, no whole-table VMEM residency).
    tok = jnp.take(params["token_table"], src_ids.astype(jnp.int32), axis=0)
    pe_s = params["pe"][:S]
    arg = t.astype(jnp.float32)[:, None] * params["time_freqs"][None, :]
    time_emb = jnp.concatenate([jnp.sin(arg), jnp.cos(arg)], axis=-1)  # (B, D)

    x = embed_combine(tok, pe_s, time_emb)
    x = encoder_stack(x, params, n_head)
    # TODO(synk): gated-attention & self-conditioning branches (config defaults
    # = off in the PyTorch module) are not implemented.
    return output_projection(x, params["w_out"], params["b_out"])


# ---------------------------------------------------------------------------
# Pure-JAX reference mirroring the PyTorch forward (eval mode, f32 math on the
# same bf16-stored weights -> the check isolates kernel-vs-XLA numerics).
# ---------------------------------------------------------------------------
def _reference_forward(params, src_ids, t, n_head):
    hp = lax.Precision.HIGHEST
    f32 = lambda a: a.astype(jnp.float32)
    D = params["token_table"].shape[1]
    B, S = src_ids.shape
    hd = D // n_head

    x = params["token_table"][src_ids] * math.sqrt(D) + params["pe"][:S][None]
    arg = t[:, None] * params["time_freqs"][None, :]
    x = x + jnp.concatenate([jnp.sin(arg), jnp.cos(arg)], axis=-1)[:, None, :]

    def ln(z, g, b):
        mu = z.mean(-1, keepdims=True)
        zc = z - mu
        var = (zc * zc).mean(-1, keepdims=True)
        return zc * lax.rsqrt(var + 1e-5) * g + b

    L = params["wqkv"].shape[0]
    for l in range(L):
        qkv = jnp.einsum("bsd,df->bsf", x, f32(params["wqkv"][l]),
                         precision=hp) + params["bqkv"][l]
        q, k, v = qkv[..., :D], qkv[..., D:2 * D], qkv[..., 2 * D:]
        split = lambda z: z.reshape(B, S, n_head, hd).transpose(0, 2, 1, 3)
        qh, kh, vh = split(q), split(k), split(v)
        s = jnp.einsum("bhqd,bhkd->bhqk", qh, kh, precision=hp) / math.sqrt(hd)
        s = s - s.max(-1, keepdims=True)
        p = jnp.exp(s)
        p = p / p.sum(-1, keepdims=True)
        ctx = jnp.einsum("bhqk,bhkd->bhqd", p, vh, precision=hp)
        ctx = ctx.transpose(0, 2, 1, 3).reshape(B, S, D)
        attn = jnp.einsum("bsd,df->bsf", ctx, f32(params["wo"][l]),
                          precision=hp) + params["bo"][l]

        h1 = ln(x + attn, params["g1"][l], params["b1n"][l])
        ff = jnp.maximum(
            jnp.einsum("bsd,df->bsf", h1, f32(params["w1"][l]),
                       precision=hp) + params["b1"][l], 0.0)
        ff = jnp.einsum("bsf,fd->bsd", ff, f32(params["w2"][l]),
                        precision=hp) + params["b2"][l]
        x = ln(h1 + ff, params["g2"][l], params["b2n"][l])

    return (jnp.einsum("bsd,dv->bsv", x, f32(params["w_out"]), precision=hp)
            + params["b_out"])


if __name__ == "__main__":
    key = jax.random.PRNGKey(0)
    k_param, k_ids, k_t = jax.random.split(key, 3)

    batch, seq_len = 2, 8
    d_model, n_head, dim_ff = 32, 4, 64
    vocab_size, num_layers, max_seq_len = 32, 2, 16

    params = init_params(k_param, vocab_size, d_model, n_head, dim_ff,
                         num_layers, max_seq_len)
    src = jax.random.randint(k_ids, (batch, seq_len), 0, vocab_size,
                             dtype=jnp.int32)
    t = jax.random.uniform(k_t, (batch,), dtype=jnp.float32)

    logits = transformer_forward(params, src, t, n_head)
    logits = jax.block_until_ready(logits)

    ref = _reference_forward(params, src, t, n_head)
    assert logits.shape == (batch, seq_len, vocab_size), logits.shape
    max_err = float(jnp.max(jnp.abs(logits - ref)))
    # bf16 MXU operands (activations) + approx reciprocal vs. f32 reference.
    assert jnp.allclose(logits, ref, atol=1e-1, rtol=1e-1), f"mismatch: {max_err}"

    print("KERNEL_OK")
</pallas_src>

<mosaic_0001>
module attributes {stable_mosaic.version = 11 : i64} {
  func.func @kernel(%arg0: i32, %arg1: memref<1x8x32xf32, #tpu.memory_space<vmem>>, %arg2: memref<8x32xf32, #tpu.memory_space<vmem>>, %arg3: memref<1x1x32xf32, #tpu.memory_space<vmem>>, %arg4: memref<1x8x32xf32, #tpu.memory_space<vmem>>) attributes {dimension_semantics = [#tpu.dimension_semantics<parallel>], iteration_bounds = array<i64: 2>, scalar_prefetch = 0 : i64, scratch_operands = 0 : i64, tpu.core_type = #tpu.core_type<tc>, window_params = [{transform_indices = @transform_0, window_bounds = array<i64: 1, 8, 32>}, {pipeline_mode = #tpu.pipeline_mode<synchronous>, transform_indices = @transform_1, window_bounds = array<i64: 8, 32>}, {transform_indices = @transform_2, window_bounds = array<i64: 1, 1, 32>}, {transform_indices = @transform_3, window_bounds = array<i64: 1, 8, 32>}]} {
    %c0 = arith.constant 0 : index
    %c0_0 = arith.constant 0 : index
    %c0_1 = arith.constant 0 : index
    %0 = vector.load %arg1[%c0, %c0_0, %c0_1] : memref<1x8x32xf32, #tpu.memory_space<vmem>>, vector<1x8x32xf32>
    %1 = vector.shape_cast %0 : vector<1x8x32xf32> to vector<8x32xf32>
    %cst = arith.constant 5.65685415 : f32
    %2 = vector.broadcast %cst : f32 to vector<8x32xf32>
    %3 = arith.mulf %1, %2 : vector<8x32xf32>
    %c0_2 = arith.constant 0 : index
    %c0_3 = arith.constant 0 : index
    %4 = vector.load %arg2[%c0_2, %c0_3] : memref<8x32xf32, #tpu.memory_space<vmem>>, vector<8x32xf32>
    %5 = arith.addf %3, %4 : vector<8x32xf32>
    %c0_4 = arith.constant 0 : index
    %c0_5 = arith.constant 0 : index
    %c0_6 = arith.constant 0 : index
    %6 = vector.load %arg3[%c0_4, %c0_5, %c0_6] : memref<1x1x32xf32, #tpu.memory_space<vmem>>, vector<1x1x32xf32>
    %7 = vector.shape_cast %6 : vector<1x1x32xf32> to vector<1x32xf32>
    %8 = vector.broadcast %7 : vector<1x32xf32> to vector<8x32xf32>
    %9 = arith.addf %5, %8 : vector<8x32xf32>
    %c0_7 = arith.constant 0 : index
    %c0_8 = arith.constant 0 : index
    %c0_9 = arith.constant 0 : index
    %10 = vector.load %arg4[%c0_7, %c0_8, %c0_9] : memref<1x8x32xf32, #tpu.memory_space<vmem>>, vector<1x8x32xf32>
    %11 = vector.shape_cast %10 : vector<1x8x32xf32> to vector<8x32xf32>
    %12 = vector.shape_cast %9 : vector<8x32xf32> to vector<1x8x32xf32>
    tpu.vector_store %arg4[%c0_7, %c0_8, %c0_9], %12 {strides = array<i32>} : memref<1x8x32xf32, #tpu.memory_space<vmem>>, vector<1x8x32xf32>,
    return
  }
  func.func @transform_0(%arg0: i32) -> (i32, i32, i32) {
    %c0_i32 = arith.constant 0 : i32
    %c0_i32_0 = arith.constant 0 : i32
    %c0_i32_1 = arith.constant 0 : i32
    return %arg0, %c0_i32, %c0_i32_0 : i32, i32, i32
  }
  func.func @transform_1(%arg0: i32) -> (i32, i32) {
    %c0_i32 = arith.constant 0 : i32
    %c0_i32_0 = arith.constant 0 : i32
    %c0_i32_1 = arith.constant 0 : i32
    return %c0_i32, %c0_i32_0 : i32, i32
  }
  func.func @transform_2(%arg0: i32) -> (i32, i32, i32) {
    %c0_i32 = arith.constant 0 : i32
    %c0_i32_0 = arith.constant 0 : i32
    %c0_i32_1 = arith.constant 0 : i32
    return %arg0, %c0_i32, %c0_i32_0 : i32, i32, i32
  }
  func.func @transform_3(%arg0: i32) -> (i32, i32, i32) {
    %c0_i32 = arith.constant 0 : i32
    %c0_i32_0 = arith.constant 0 : i32
    %c0_i32_1 = arith.constant 0 : i32
    return %arg0, %c0_i32, %c0_i32_0 : i32, i32, i32
  }
}

</mosaic_0001>

<llo_original>
// kernel: tpu_custom_call.1
$region0: #{tpu_custom_call.1}
  #allocation0 [shape = 'u32[]', space=smem, size = 0x4, offset = 0x4, fixed_abs, tag = 'smem constant byte address 0x4 - core index']
  #allocation1 [shape = 'u32[144,128]{1,0:T(1,128)}', space=vmem, size = 0x12000, scoped, tag = 'internal scratch']
  %s0 = inlined_call_operand.hbm [shape: f32[2,8,32], index: 0, kind: input, shape index: {}]
  %s1 = inlined_call_operand.hbm [shape: f32[8,32], index: 1, kind: input, shape index: {}]
  %s2 = inlined_call_operand.vmem [shape: f32[2,1,32], index: 2, kind: input, shape index: {}]
  %s3 = inlined_call_operand.hbm [shape: f32[2,8,32], index: 3, kind: output, shape index: {}]
  %s4 = sld [smem:[#allocation0]]
  $region53: #{tpu_custom_call.1} parent=0
    _
  %s6 = ssub.s32 1, %s4
  %s7 = scalar_select 0, %s6, %s4
  $region1: #{tpu_custom_call.1} parent=0
    #allocation2 [shape = 'u8[8192]{0}', space=vmem, size = 0x2000, scoped, tag = 'input window, operand 0']
    #allocation3 [shape = 's32[2]{0}', space=sflag, size = 0x8, scoped, tag = 'scoped memory for tpu_custom_call.1']
    #allocation4 [shape = 's32[2]{0}', space=sflag, size = 0x8, scoped, tag = 'scoped memory for tpu_custom_call.1']
    #allocation5 [shape = 'u8[4096]{0}', space=vmem, size = 0x1000, scoped, tag = 'input window, operand 1, single buffered']
    #allocation6 [shape = 's32[1]{0}', space=sflag, size = 0x4, scoped, tag = 'scoped memory for tpu_custom_call.1']
    #allocation7 [shape = 'u8[8192]{0}', space=vmem, size = 0x2000, scoped, tag = 'output window, operand 0']
    %8 = vsyncpa [#allocation3], 0
    %s9 = scalar_lea.sflag [#allocation3], 1
    %10 = vsyncpa %s9, 0
    %11 = vsyncpa [#allocation6], 0
    %12 = vsyncpa [#allocation4], 0
    %s13 = scalar_lea.sflag [#allocation4], 1
    %14 = vsyncpa %s13, 0
    loop: start=0, step=1, limit=4
    $region2: #{tpu_custom_call.1} parent=1 // loop_pre_header
      _
    $region3: #{tpu_custom_call.1} parent=1 // loop_header
      %s16 = sphi 0, %s20
      %p17 = scmp.ge.s32.totalorder %s16, 4
      %s26 = sphi 0, %s28
      %s29 = sphi 0, %s26
      %s30 = sphi 0, %s29
      %s46 = sphi 0, %s30
      %s50 = sphi 0, %s50
      %s52 = sphi 0, %s50
      %s53 = sphi 0, %s52
      %s67 = sphi 0, %s53
      %s73 = sphi 0, %s75
      %s76 = sphi 0, %s73
      %s77 = sphi 0, %s76
      %s93 = sphi 0, %s77
      %s99 = sphi 0, %s101
      %s102 = sphi 0, %s99
      %s103 = sphi 0, %s102
      %s119 = sphi 0, %s103
    $region4: #{tpu_custom_call.1} parent=1 // loop_header_branch
      %19 = sbr.rel (%p17) target = $region8
    $region5: #{tpu_custom_call.1} parent=1 // loop_body
      %s21 = ssub.s32 %s16, 1
      %s22 = ssub.s32 %s16, 2
      %s23 = sadd.s32 %s16, 1
      %s24 = ssub.s32 %s16, %s23
      %p25 = scmp.eq.s32.totalorder %s24, 0
      %s27 = sadd.s32 %s26, 1
      %s28 = scalar_select %p25, %s26, %s27
      %p31 = pneg %p25
      %p32 = scmp.eq.s32.totalorder %s16, 1
      %p33 = por %p31, %p32
      %p34 = scmp.ne.s32.totalorder %s26, %s29
      %p35 = scmp.eq.s32.totalorder %s16, 0
      %p36 = por %p34, %p35
      %p37 = scmp.ne.s32.totalorder %s26, %s29
      %p38 = scmp.eq.s32.totalorder %s21, 1
      %p39 = por %p37, %p38
      %p40 = scmp.ne.s32.totalorder %s29, %s30
      %p41 = scmp.eq.s32.totalorder %s21, 0
      %p42 = por %p40, %p41
      %p43 = scmp.ne.s32.totalorder %s29, %s30
      %p44 = scmp.eq.s32.totalorder %s22, 1
      %p45 = por %p43, %p44
      %p47 = scmp.ne.s32.totalorder %s30, %s46
      %p48 = scmp.eq.s32.totalorder %s22, 0
      %p49 = por %p47, %p48
      %s51 = sadd.s32 %s50, 1
      %p54 = scmp.eq.s32.totalorder %s16, 1
      %p55 = scmp.ne.s32.totalorder %s50, %s52
      %p56 = scmp.eq.s32.totalorder %s16, 0
      %p57 = por %p55, %p56
      %p58 = scmp.ne.s32.totalorder %s50, %s52
      %p59 = scmp.eq.s32.totalorder %s21, 1
      %p60 = por %p58, %p59
      %p61 = scmp.ne.s32.totalorder %s52, %s53
      %p62 = scmp.eq.s32.totalorder %s21, 0
      %p63 = por %p61, %p62
      %p64 = scmp.ne.s32.totalorder %s52, %s53
      %p65 = scmp.eq.s32.totalorder %s22, 1
      %p66 = por %p64, %p65
      %p68 = scmp.ne.s32.totalorder %s53, %s67
      %p69 = scmp.eq.s32.totalorder %s22, 0
      %p70 = por %p68, %p69
      %s71 = ssub.s32 %s16, %s23
      %p72 = scmp.eq.s32.totalorder %s71, 0
      %s74 = sadd.s32 %s73, 1
      %s75 = scalar_select %p72, %s73, %s74
      %p78 = pneg %p72
      %p79 = scmp.eq.s32.totalorder %s16, 1
      %p80 = por %p78, %p79
      %p81 = scmp.ne.s32.totalorder %s73, %s76
      %p82 = scmp.eq.s32.totalorder %s16, 0
      %p83 = por %p81, %p82
      %p84 = scmp.ne.s32.totalorder %s73, %s76
      %p85 = scmp.eq.s32.totalorder %s21, 1
      %p86 = por %p84, %p85
      %p87 = scmp.ne.s32.totalorder %s76, %s77
      %p88 = scmp.eq.s32.totalorder %s21, 0
      %p89 = por %p87, %p88
      %p90 = scmp.ne.s32.totalorder %s76, %s77
      %p91 = scmp.eq.s32.totalorder %s22, 1
      %p92 = por %p90, %p91
      %p94 = scmp.ne.s32.totalorder %s77, %s93
      %p95 = scmp.eq.s32.totalorder %s22, 0
      %p96 = por %p94, %p95
      %s97 = ssub.s32 %s16, %s23
      %p98 = scmp.eq.s32.totalorder %s97, 0
      %s100 = sadd.s32 %s99, 1
      %s101 = scalar_select %p98, %s99, %s100
      %p104 = pneg %p98
      %p105 = scmp.eq.s32.totalorder %s16, 1
      %p106 = por %p104, %p105
      %p107 = scmp.ne.s32.totalorder %s99, %s102
      %p108 = scmp.eq.s32.totalorder %s16, 0
      %p109 = por %p107, %p108
      %p110 = scmp.ne.s32.totalorder %s99, %s102
      %p111 = scmp.eq.s32.totalorder %s21, 1
      %p112 = por %p110, %p111
      %p113 = scmp.ne.s32.totalorder %s102, %s103
      %p114 = scmp.eq.s32.totalorder %s21, 0
      %p115 = por %p113, %p114
      %p116 = scmp.ne.s32.totalorder %s102, %s103
      %p117 = scmp.eq.s32.totalorder %s22, 1
      %p118 = por %p116, %p117
      %p120 = scmp.ne.s32.totalorder %s103, %s119
      %p121 = scmp.eq.s32.totalorder %s22, 0
      %p122 = por %p120, %p121
      %p123 = scmp.le.s32.totalorder 1, %s16
      %p124 = scmp.lt.s32.totalorder %s16, 3
      %p125 = pnand %p123, %p124
      %p126 = pneg %p125
      // Predicated region
      $region9: #{tpu_custom_call.1} parent=5 // pred_check
        _
      $region10: #{tpu_custom_call.1} parent=5 // pred_check_branch
        %128 = sbr.rel (%p125) target = $region12
      $region11: #{tpu_custom_call.1} parent=5 // pred_region
        %s129 = ssub.s32 %s16, 1
        // Predicated region
        $region13: #{tpu_custom_call.1} parent=11 // pred_check
          %p130 = pneg %p63
        $region14: #{tpu_custom_call.1} parent=11 // pred_check_branch
          %132 = sbr.rel (%p130) target = $region16
        $region15: #{tpu_custom_call.1} parent=11 // pred_region
          %s134 = ssub.s32 128, 128
          %135 = vsyncadd [#allocation6], %s134
          %s137 = sshll.u32 [#allocation5], 4
          %s138 = int_to_ptr.vmem [resolvable:$true] %s137
          %140 = dma.hbm_to_vmem [thread:$0]  %s1, 128, %s138, [#allocation6]
        $region16: #{tpu_custom_call.1} parent=11 // pred_fallthru
          _
      $region12: #{tpu_custom_call.1} parent=5 // pred_fallthru
        _
      %p141 = scmp.lt.s32.totalorder %s16, 2
      // Predicated region
      $region17: #{tpu_custom_call.1} parent=5 // pred_check
        %p142 = pneg %p141
      $region18: #{tpu_custom_call.1} parent=5 // pred_check_branch
        %144 = sbr.rel (%p142) target = $region20
      $region19: #{tpu_custom_call.1} parent=5 // pred_region
        // Predicated region
        $region21: #{tpu_custom_call.1} parent=19 // pred_check
          %p145 = pneg %p36
        $region22: #{tpu_custom_call.1} parent=19 // pred_check_branch
          %147 = sbr.rel (%p145) target = $region24
        $region23: #{tpu_custom_call.1} parent=19 // pred_region
          %s148 = sand.u32 %s26, 1
          %s149 = scalar_lea.sflag [#allocation3], %s148
          %s150 = sand.u32 %s26, 1
          %s151 = smul.addr %s150, 8
          %s152 = scalar_lea.vmem [#allocation2], %s151
          %s154 = ssub.s32 128, 128
          %155 = vsyncadd %s149, %s154
          %s156 = smul.addr %s16, 128
          %s157 = scalar_lea.hbm %s0, %s156
          %s159 = sshll.u32 %s152, 4
          %s160 = int_to_ptr.vmem [resolvable:$true] %s159
          %162 = dma.hbm_to_vmem [thread:$0]  %s157, 128, %s160, %s149
        $region24: #{tpu_custom_call.1} parent=19 // pred_fallthru
          _
        // Predicated region
        $region25: #{tpu_custom_call.1} parent=19 // pred_check
          %p163 = pneg %p83
        $region26: #{tpu_custom_call.1} parent=19 // pred_check_branch
          %165 = sbr.rel (%p163) target = $region28
        $region27: #{tpu_custom_call.1} parent=19 // pred_region
          %p166 = scmp.lt.s32.totalorder %s16, 1
          %s167 = scalar_select %p166, %s16, 1
          %s168 = scalar_lea.vmem %s2, %s167
        $region28: #{tpu_custom_call.1} parent=19 // pred_fallthru
          _
      $region20: #{tpu_custom_call.1} parent=5 // pred_fallthru
        _
      %p169 = scmp.le.s32.totalorder 1, %s16
      %p170 = scmp.lt.s32.totalorder %s16, 3
      %p171 = pnand %p169, %p170
      %p172 = pneg %p171
      // Predicated region
      $region29: #{tpu_custom_call.1} parent=5 // pred_check
        _
      $region30: #{tpu_custom_call.1} parent=5 // pred_check_branch
        %174 = sbr.rel (%p171) target = $region32
      $region31: #{tpu_custom_call.1} parent=5 // pred_region
        %s175 = ssub.s32 %s16, 1
        %s176 = sand.u32 %s29, 1
        %s177 = scalar_lea.sflag [#allocation3], %s176
        %s178 = sand.u32 %s29, 1
        %s179 = smul.addr %s178, 8
        %s180 = scalar_lea.vmem [#allocation2], %s179
        // Predicated region
        $region33: #{tpu_custom_call.1} parent=31 // pred_check
          %p181 = pneg %p42
        $region34: #{tpu_custom_call.1} parent=31 // pred_check_branch
          %183 = sbr.rel (%p181) target = $region36
        $region35: #{tpu_custom_call.1} parent=31 // pred_region
          %184 = dma.done %s177, 128
        $region36: #{tpu_custom_call.1} parent=31 // pred_fallthru
          _
        // Predicated region
        $region37: #{tpu_custom_call.1} parent=31 // pred_check
          %p185 = pneg %p63
        $region38: #{tpu_custom_call.1} parent=31 // pred_check_branch
          %187 = sbr.rel (%p185) target = $region40
        $region39: #{tpu_custom_call.1} parent=31 // pred_region
          %188 = dma.done [#allocation6], 128
        $region40: #{tpu_custom_call.1} parent=31 // pred_fallthru
          _
        %s189 = sand.u32 %s29, 1
        %s190 = scalar_lea.sflag [#allocation3], %s189
        %s191 = sand.u32 %s29, 1
        %s192 = smul.addr %s191, 8
        %s193 = scalar_lea.vmem [#allocation2], %s192
        %p194 = pneg %p42
        %p195 = pneg %p39
        %p196 = pneg %p63
        %p197 = pneg %p60
        %p198 = scmp.lt.s32.totalorder %s21, 1
        %s199 = scalar_select %p198, %s21, 1
        %s200 = scalar_lea.vmem %s2, %s199
        %p201 = pneg %p89
        %p202 = pneg %p86
        %p203 = pneg %p115
        %p204 = pneg %p112
        %s205 = sand.u32 %s102, 1
        %s206 = scalar_lea.sflag [#allocation4], %s205
        %s207 = sand.u32 %s102, 1
        %s208 = smul.addr %s207, 8
        %s209 = scalar_lea.vmem [#allocation7], %s208
        %p210 = scmp.lt.s32.totalorder %s21, 1
        %s211 = scalar_select %p210, %s21, 1
        %s212 = scalar_lea.vmem %s2, %s211
        %v213 = vld [vmem:[%s180] sm:$0xff]
        %v214 = vmul.f32 %v213, 5.656854
        %v215 = vld [vmem:[#allocation5] sm:$0xff]
        %v216 = vadd.f32 %v214, %v215
        %v217 = vld [vmem:[%s212] sm:$0x1]
        %v219 = vlaneseq
        %v220 = vshrl.u32 %v219, 7
        %v221 = vsub.s32 0, %v220
        %v222 = vrot.slane %v217, %v221
        %v224 = vadd.f32 %v216, %v222
        %vm225 = vcmask 261120
        %226 = vst.msk [vmem:[%s209] sm:$0xff] %vm225, %v224
        %s227 = sand.u32 %s102, 1
        %s228 = scalar_lea.sflag [#allocation4], %s227
        %s229 = sand.u32 %s102, 1
        %s230 = smul.addr %s229, 8
        %s231 = scalar_lea.vmem [#allocation7], %s230
        // Predicated region
        $region41: #{tpu_custom_call.1} parent=31 // pred_check
          %p232 = pneg %p112
        $region42: #{tpu_custom_call.1} parent=31 // pred_check_branch
          %234 = sbr.rel (%p232) target = $region44
        $region43: #{tpu_custom_call.1} parent=31 // pred_region
          %s236 = ssub.s32 128, 128
          %237 = vsyncadd %s228, %s236
          %s238 = smul.addr %s21, 128
          %s239 = scalar_lea.hbm %s3, %s238
          %s241 = sshll.u32 %s231, 4
          %s242 = int_to_ptr.vmem [resolvable:$true] %s241
          %244 = dma.vmem_to_hbm [thread:$0]  %s242, 128, %s239, %s228
        $region44: #{tpu_custom_call.1} parent=31 // pred_fallthru
          _
      $region32: #{tpu_custom_call.1} parent=5 // pred_fallthru
        _
      %p245 = scmp.le.s32.totalorder 2, %s16
      // Predicated region
      $region45: #{tpu_custom_call.1} parent=5 // pred_check
        %p246 = pneg %p245
      $region46: #{tpu_custom_call.1} parent=5 // pred_check_branch
        %248 = sbr.rel (%p246) target = $region48
      $region47: #{tpu_custom_call.1} parent=5 // pred_region
        %s249 = ssub.s32 %s16, 2
        // Predicated region
        $region49: #{tpu_custom_call.1} parent=47 // pred_check
          %p250 = pneg %p118
        $region50: #{tpu_custom_call.1} parent=47 // pred_check_branch
          %252 = sbr.rel (%p250) target = $region52
        $region51: #{tpu_custom_call.1} parent=47 // pred_region
          %s253 = sand.u32 %s103, 1
          %s254 = scalar_lea.sflag [#allocation4], %s253
          %s255 = sand.u32 %s103, 1
          %s256 = smul.addr %s255, 8
          %s257 = scalar_lea.vmem [#allocation7], %s256
          %258 = dma.done %s254, 128
        $region52: #{tpu_custom_call.1} parent=47 // pred_fallthru
          _
      $region48: #{tpu_custom_call.1} parent=5 // pred_fallthru
        _
    $region6: #{tpu_custom_call.1} parent=1 // loop_footer
      %s20 = sadd.s32 1, %s16
    $region7: #{tpu_custom_call.1} parent=1 // loop_footer_branch
      %15 = sbr.rel target = $region3
    $region8: #{tpu_custom_call.1} parent=1 // loop_exit
      _
    %259 = vsyncpa [#allocation3], 1
    %s260 = scalar_lea.sflag [#allocation3], 1
    %261 = vsyncpa %s260, 1
    %262 = vsyncpa [#allocation6], 1
    %263 = vsyncpa [#allocation4], 1
    %s264 = scalar_lea.sflag [#allocation4], 1
    %265 = vsyncpa %s264, 1

</llo_original>
